<compile_context>
chip_gen: v7x
topology: tpu7x:2x2x1
jax: 0.10.0
libtpu: 0.0.40
codegen_flags: <defaults>
</compile_context>

<pallas_src>
import math

import jax
import jax.numpy as jnp
from jax.experimental import pallas as pl
from jax.experimental.pallas import tpu as pltpu


def _make_senti_kernel(Bt, S, D, H):
    inv_h = 1.0 / H

    def kernel(x_ref, ws_ref, bs_ref, wvT_ref, bv_ref, woT_ref, bo_ref, e_ref,
               out_ref, attn_ref):
        # x tile: (Bt*S, D). Cast once so MXU gets bf16 inputs (f32 accumulate).
        x = x_ref[...].astype(jnp.bfloat16)

        # Fused per-head scores: (Bt*S, H). ws already folds Q, Wq, Wk and the
        # 1/sqrt(dh) scale; bs folds the bias contributions.
        scores = jnp.dot(x, ws_ref[...], preferred_element_type=jnp.float32)
        scores = scores + bs_ref[...]
        scores = scores.reshape(Bt, S, H)

        # Per-(batch, head) softmax over the sequence axis (axis=1), f32.
        m = jnp.max(scores, axis=1, keepdims=True)            # (Bt, 1, H)
        p = jnp.exp(scores - m)                               # (Bt, S, H)
        denom = jnp.sum(p, axis=1, keepdims=True)             # (Bt, 1, H)
        p = p * pl.reciprocal(denom, approx=True)             # (Bt, S, H)

        # Head-averaged attention weights, lane-dense (Bt, S) slab.
        attn_ref[...] = (jnp.sum(p, axis=-1) * inv_h).astype(attn_ref.dtype)

        # Value projection with pre-transposed bf16 weight: (Bt*S, D), f32 acc.
        vp = jnp.dot(x, wvT_ref[...], preferred_element_type=jnp.float32)
        vp = vp + bv_ref[...]

        # Head-concat weighted sum without a per-head loop / concatenate:
        # expand p (Bt*S, H) -> (Bt*S, D) via the 0/1 head-expansion matrix,
        # multiply with vp, reduce over the sequence axis.
        p_full = jnp.dot(p.reshape(Bt * S, H), e_ref[...],
                         preferred_element_type=jnp.float32)  # (Bt*S, D)
        o = jnp.sum((p_full * vp).reshape(Bt, S, D), axis=1)  # (Bt, D)

        # Output projection (pre-transposed bf16 weight).
        o = jnp.dot(o.astype(jnp.bfloat16), woT_ref[...],
                    preferred_element_type=jnp.float32) + bo_ref[...]
        out_ref[...] = o.astype(out_ref.dtype)

    return kernel


def senti_classifier_forward(last_hidden_state, params, num_heads,
                             block_batch=None):
    """SentiClassifier.forward(..., returnAttnWeight=True).

    Returns (sentVec (B, D), attnWeight (B, 1, S)).
    """
    B, S, D = last_hidden_state.shape
    H = num_heads
    assert D % H == 0, "hidDim must be divisible by num_heads"
    dh = D // H
    scale = 1.0 / math.sqrt(dh)

    # --- Batch tiling: Bt batch elements per grid step -> MXU M-dim = Bt*S. ---
    if block_batch is None:
        target_rows = 512  # >= 512 rows fills 4x128 (v5e) / 2x256 (v6e/v7x) MXUs
        bt = min(B, max(1, (target_rows + S - 1) // S))
        while B % bt != 0:  # Bt must divide B evenly
            bt -= 1
        block_batch = bt
    Bt = block_batch
    assert B % Bt == 0

    f32, bf16 = jnp.float32, jnp.bfloat16

    # --- Hoisted / fused (batch-independent) weight preprocessing. ---
    # Query projection (query length is 1): qp = Q @ Wq^T + bq.
    qp = (params["Q"].astype(f32) @ params["Wq"].astype(f32).T
          + params["bq"].astype(f32))                        # (1, D)
    qh = qp.reshape(H, dh)                                    # (H, dh)

    # Fold Wk / bk with the length-1 query: scores = x @ w_score + b_score.
    wk_r = params["Wk"].astype(f32).reshape(H, dh, D)         # Wk[h*dh+d, k]
    w_score = jnp.einsum("hd,hdk->kh", qh, wk_r) * scale      # (D, H)
    b_score = (jnp.sum(qh * params["bk"].astype(f32).reshape(H, dh), axis=-1)
               * scale).reshape(1, H)                         # (1, H)

    # Pre-transposed bf16 weights (f32 accumulation in-kernel).
    wvT = params["Wv"].astype(f32).T.astype(bf16)             # (D, D)
    woT = params["Wo"].astype(f32).T.astype(bf16)             # (D, D)
    bv = params["bv"].astype(f32)                             # (1, D)
    bo = params["bo"].astype(f32)                             # (1, D)
    w_score_b = w_score.astype(bf16)

    # (H, D) 0/1 head-expansion matrix: E[h, h*dh + d] = 1.
    expand = (jnp.arange(D)[None, :] // dh
              == jnp.arange(H)[:, None]).astype(f32)          # (H, D)

    # Flatten batch/seq so each grid step sees a dense (Bt*S, D) activation slab.
    x2d = last_hidden_state.reshape(B * S, D)

    kernel = _make_senti_kernel(Bt, S, D, H)
    const = lambda b: (0, 0)

    out_vec, attn = pl.pallas_call(
        kernel,
        out_shape=(
            jax.ShapeDtypeStruct((B, D), last_hidden_state.dtype),
            jax.ShapeDtypeStruct((B, S), last_hidden_state.dtype),
        ),
        grid_spec=pltpu.PrefetchScalarGridSpec(
            num_scalar_prefetch=0,
            grid=(B // Bt,),
            in_specs=[
                pl.BlockSpec((Bt * S, D), lambda b: (b, 0)),   # activation slab
                pl.BlockSpec((D, H), const),                   # fused score weight
                pl.BlockSpec((1, H), const),                   # fused score bias
                pl.BlockSpec((D, D), const),                   # Wv^T (bf16)
                pl.BlockSpec((1, D), const),                   # bv
                pl.BlockSpec((D, D), const),                   # Wo^T (bf16)
                pl.BlockSpec((1, D), const),                   # bo
                pl.BlockSpec((H, D), const),                   # head-expansion E
            ],
            out_specs=[
                pl.BlockSpec((Bt, D), lambda b: (b, 0)),       # sentVec tile
                pl.BlockSpec((Bt, S), lambda b: (b, 0)),       # attn tile (lane-dense)
            ],
        ),
        # Batch axis is embarrassingly parallel -> both TensorCores on v7x.
        # NOTE: for very large D on v7x, additionally single-buffer the constant
        # weight inputs (pipeline_mode=pl.Buffered(1)) and/or raise
        # vmem_limit_bytes; unnecessary at these sizes.
        compiler_params=pltpu.CompilerParams(
            dimension_semantics=("parallel",)),
    )(x2d, w_score_b, b_score, wvT, bv, woT, bo, expand)

    return out_vec, attn[:, None, :]


def init_params(key, hid_dim):
    ks = jax.random.split(key, 6)
    std = 0.1
    return {
        "Q":  jax.random.normal(ks[0], (1, hid_dim), jnp.float32),  # nn.Parameter(randn(1, hidDim))
        "Wq": jax.random.normal(ks[1], (hid_dim, hid_dim), jnp.float32) * std,
        "bq": jnp.zeros((1, hid_dim), jnp.float32),
        "Wk": jax.random.normal(ks[2], (hid_dim, hid_dim), jnp.float32) * std,
        "bk": jnp.zeros((1, hid_dim), jnp.float32),
        "Wv": jax.random.normal(ks[3], (hid_dim, hid_dim), jnp.float32) * std,
        "bv": jnp.zeros((1, hid_dim), jnp.float32),
        "Wo": jax.random.normal(ks[4], (hid_dim, hid_dim), jnp.float32) * std,
        "bo": jnp.zeros((1, hid_dim), jnp.float32),
    }


def reference_forward(last_hidden_state, params, num_heads):
    """Pure-JAX f32 reference (same math) for a sanity check."""
    B, S, D = last_hidden_state.shape
    dh = D // num_heads
    q = jnp.broadcast_to(params["Q"], (B, 1, D))
    qp = q @ params["Wq"].T + params["bq"]
    kp = last_hidden_state @ params["Wk"].T + params["bk"]
    vp = last_hidden_state @ params["Wv"].T + params["bv"]
    qh = qp.reshape(B, 1, num_heads, dh).transpose(0, 2, 1, 3)
    kh = kp.reshape(B, S, num_heads, dh).transpose(0, 2, 1, 3)
    vh = vp.reshape(B, S, num_heads, dh).transpose(0, 2, 1, 3)
    s = jnp.einsum("bhqd,bhkd->bhqk", qh, kh) / math.sqrt(dh)
    p = jax.nn.softmax(s, axis=-1)
    o = jnp.einsum("bhqk,bhkd->bhqd", p, vh).transpose(0, 2, 1, 3).reshape(B, 1, D)
    o = o @ params["Wo"].T + params["bo"]
    return o[:, 0, :], p.mean(axis=1)


if __name__ == "__main__":
    B, S, D, H = 2, 8, 32, 4   # batch, seq, hidDim, heads

    key = jax.random.PRNGKey(0)
    k_x, k_p = jax.random.split(key)
    last_hidden_state = jax.random.normal(k_x, (B, S, D), jnp.float32)
    params = init_params(k_p, D)

    sent_vec, attn_w = senti_classifier_forward(last_hidden_state, params, H)
    sent_vec = jax.block_until_ready(sent_vec)
    attn_w = jax.block_until_ready(attn_w)

    ref_vec, ref_attn = reference_forward(last_hidden_state, params, H)
    assert sent_vec.shape == (B, D)
    assert attn_w.shape == (B, 1, S)
    # bf16 MXU inputs with f32 accumulation -> compare with a relaxed tolerance.
    assert jnp.allclose(sent_vec, ref_vec, atol=2e-2, rtol=2e-2), (
        float(jnp.max(jnp.abs(sent_vec - ref_vec))))
    assert jnp.allclose(attn_w[:, 0, :], ref_attn[:, 0, :], atol=2e-2, rtol=2e-2), (
        float(jnp.max(jnp.abs(attn_w[:, 0, :] - ref_attn[:, 0, :]))))

    print("KERNEL_OK")
</pallas_src>

<mosaic_0001>
module attributes {stable_mosaic.version = 11 : i64} {
  func.func @kernel(%arg0: i32, %arg1: memref<16x32xf32, #tpu.memory_space<vmem>>, %arg2: memref<32x4xbf16, #tpu.memory_space<vmem>>, %arg3: memref<1x4xf32, #tpu.memory_space<vmem>>, %arg4: memref<32x32xbf16, #tpu.memory_space<vmem>>, %arg5: memref<1x32xf32, #tpu.memory_space<vmem>>, %arg6: memref<32x32xbf16, #tpu.memory_space<vmem>>, %arg7: memref<1x32xf32, #tpu.memory_space<vmem>>, %arg8: memref<4x32xf32, #tpu.memory_space<vmem>>, %arg9: memref<2x32xf32, #tpu.memory_space<vmem>>, %arg10: memref<2x8xf32, #tpu.memory_space<vmem>>) attributes {dimension_semantics = [#tpu.dimension_semantics<parallel>], iteration_bounds = array<i64: 1>, scalar_prefetch = 0 : i64, scratch_operands = 0 : i64, tpu.core_type = #tpu.core_type<tc>, window_params = [{transform_indices = @transform_0, window_bounds = array<i64: 16, 32>}, {pipeline_mode = #tpu.pipeline_mode<synchronous>, transform_indices = @transform_1, window_bounds = array<i64: 32, 4>}, {pipeline_mode = #tpu.pipeline_mode<synchronous>, transform_indices = @transform_2, window_bounds = array<i64: 1, 4>}, {pipeline_mode = #tpu.pipeline_mode<synchronous>, transform_indices = @transform_3, window_bounds = array<i64: 32, 32>}, {pipeline_mode = #tpu.pipeline_mode<synchronous>, transform_indices = @transform_4, window_bounds = array<i64: 1, 32>}, {pipeline_mode = #tpu.pipeline_mode<synchronous>, transform_indices = @transform_5, window_bounds = array<i64: 32, 32>}, {pipeline_mode = #tpu.pipeline_mode<synchronous>, transform_indices = @transform_6, window_bounds = array<i64: 1, 32>}, {pipeline_mode = #tpu.pipeline_mode<synchronous>, transform_indices = @transform_7, window_bounds = array<i64: 4, 32>}, {transform_indices = @transform_8, window_bounds = array<i64: 2, 32>}, {transform_indices = @transform_9, window_bounds = array<i64: 2, 8>}]} {
    %c0 = arith.constant 0 : index
    %c0_0 = arith.constant 0 : index
    %0 = vector.load %arg1[%c0, %c0_0] : memref<16x32xf32, #tpu.memory_space<vmem>>, vector<16x32xf32>
    %1 = arith.truncf %0 : vector<16x32xf32> to vector<16x32xbf16>
    %c0_1 = arith.constant 0 : index
    %c0_2 = arith.constant 0 : index
    %2 = vector.load %arg2[%c0_1, %c0_2] : memref<32x4xbf16, #tpu.memory_space<vmem>>, vector<32x4xbf16>
    %cst = arith.constant dense<0.000000e+00> : vector<16x4xf32>
    %3 = tpu.matmul %1, %2, %cst {dimension_numbers = #tpu.dot_dimension_numbers<[1], [0], [0], [1], [0, 0, 1, 1], [], []>} : vector<16x32xbf16>, vector<32x4xbf16>, vector<16x4xf32> -> vector<16x4xf32>
    %c0_3 = arith.constant 0 : index
    %c0_4 = arith.constant 0 : index
    %4 = vector.load %arg3[%c0_3, %c0_4] : memref<1x4xf32, #tpu.memory_space<vmem>>, vector<1x4xf32>
    %5 = vector.broadcast %4 : vector<1x4xf32> to vector<16x4xf32>
    %6 = arith.addf %3, %5 : vector<16x4xf32>
    %7 = vector.shape_cast %6 : vector<16x4xf32> to vector<2x8x4xf32>
    %cst_5 = arith.constant dense<0xFF800000> : vector<2x4xf32>
    %8 = vector.multi_reduction <maximumf>, %7, %cst_5 [1] : vector<2x8x4xf32> to vector<2x4xf32>
    %9 = vector.shape_cast %8 : vector<2x4xf32> to vector<2x1x4xf32>
    %10 = vector.broadcast %9 : vector<2x1x4xf32> to vector<2x8x4xf32>
    %11 = arith.subf %7, %10 : vector<2x8x4xf32>
    %12 = math.exp %11 : vector<2x8x4xf32>
    %cst_6 = arith.constant dense<0.000000e+00> : vector<2x4xf32>
    %13 = vector.multi_reduction <add>, %12, %cst_6 [1] : vector<2x8x4xf32> to vector<2x4xf32>
    %14 = vector.shape_cast %13 : vector<2x4xf32> to vector<2x1x4xf32>
    %15 = tpu.reciprocal %14 {approx = true} : vector<2x1x4xf32> -> vector<2x1x4xf32>
    %16 = vector.broadcast %15 : vector<2x1x4xf32> to vector<2x8x4xf32>
    %17 = arith.mulf %12, %16 : vector<2x8x4xf32>
    %cst_7 = arith.constant dense<0.000000e+00> : vector<2x8xf32>
    %18 = vector.multi_reduction <add>, %17, %cst_7 [2] : vector<2x8x4xf32> to vector<2x8xf32>
    %cst_8 = arith.constant 2.500000e-01 : f32
    %19 = vector.broadcast %cst_8 : f32 to vector<2x8xf32>
    %20 = arith.mulf %18, %19 : vector<2x8xf32>
    %c0_9 = arith.constant 0 : index
    %c0_10 = arith.constant 0 : index
    %21 = vector.load %arg10[%c0_9, %c0_10] : memref<2x8xf32, #tpu.memory_space<vmem>>, vector<2x8xf32>
    tpu.vector_store %arg10[%c0_9, %c0_10], %20 {strides = array<i32>} : memref<2x8xf32, #tpu.memory_space<vmem>>, vector<2x8xf32>,
    %c0_11 = arith.constant 0 : index
    %c0_12 = arith.constant 0 : index
    %22 = vector.load %arg4[%c0_11, %c0_12] : memref<32x32xbf16, #tpu.memory_space<vmem>>, vector<32x32xbf16>
    %cst_13 = arith.constant dense<0.000000e+00> : vector<16x32xf32>
    %23 = tpu.matmul %1, %22, %cst_13 {dimension_numbers = #tpu.dot_dimension_numbers<[1], [0], [0], [1], [0, 0, 1, 1], [], []>} : vector<16x32xbf16>, vector<32x32xbf16>, vector<16x32xf32> -> vector<16x32xf32>
    %c0_14 = arith.constant 0 : index
    %c0_15 = arith.constant 0 : index
    %24 = vector.load %arg5[%c0_14, %c0_15] : memref<1x32xf32, #tpu.memory_space<vmem>>, vector<1x32xf32>
    %25 = vector.broadcast %24 : vector<1x32xf32> to vector<16x32xf32>
    %26 = arith.addf %23, %25 : vector<16x32xf32>
    %27 = vector.shape_cast %17 : vector<2x8x4xf32> to vector<16x4xf32>
    %c0_16 = arith.constant 0 : index
    %c0_17 = arith.constant 0 : index
    %28 = vector.load %arg8[%c0_16, %c0_17] : memref<4x32xf32, #tpu.memory_space<vmem>>, vector<4x32xf32>
    %cst_18 = arith.constant dense<0.000000e+00> : vector<16x32xf32>
    %29 = tpu.matmul %27, %28, %cst_18 {dimension_numbers = #tpu.dot_dimension_numbers<[1], [0], [0], [1], [0, 0, 1, 1], [], []>} : vector<16x4xf32>, vector<4x32xf32>, vector<16x32xf32> -> vector<16x32xf32>
    %30 = arith.mulf %29, %26 : vector<16x32xf32>
    %31 = vector.shape_cast %30 : vector<16x32xf32> to vector<2x8x32xf32>
    %cst_19 = arith.constant dense<0.000000e+00> : vector<2x32xf32>
    %32 = vector.multi_reduction <add>, %31, %cst_19 [1] : vector<2x8x32xf32> to vector<2x32xf32>
    %33 = arith.truncf %32 : vector<2x32xf32> to vector<2x32xbf16>
    %c0_20 = arith.constant 0 : index
    %c0_21 = arith.constant 0 : index
    %34 = vector.load %arg6[%c0_20, %c0_21] : memref<32x32xbf16, #tpu.memory_space<vmem>>, vector<32x32xbf16>
    %cst_22 = arith.constant dense<0.000000e+00> : vector<2x32xf32>
    %35 = tpu.matmul %33, %34, %cst_22 {dimension_numbers = #tpu.dot_dimension_numbers<[1], [0], [0], [1], [0, 0, 1, 1], [], []>} : vector<2x32xbf16>, vector<32x32xbf16>, vector<2x32xf32> -> vector<2x32xf32>
    %c0_23 = arith.constant 0 : index
    %c0_24 = arith.constant 0 : index
    %36 = vector.load %arg7[%c0_23, %c0_24] : memref<1x32xf32, #tpu.memory_space<vmem>>, vector<1x32xf32>
    %37 = vector.broadcast %36 : vector<1x32xf32> to vector<2x32xf32>
    %38 = arith.addf %35, %37 : vector<2x32xf32>
    %c0_25 = arith.constant 0 : index
    %c0_26 = arith.constant 0 : index
    %39 = vector.load %arg9[%c0_25, %c0_26] : memref<2x32xf32, #tpu.memory_space<vmem>>, vector<2x32xf32>
    tpu.vector_store %arg9[%c0_25, %c0_26], %38 {strides = array<i32>} : memref<2x32xf32, #tpu.memory_space<vmem>>, vector<2x32xf32>,
    return
  }
  func.func @transform_0(%arg0: i32) -> (i32, i32) {
    %c0_i32 = arith.constant 0 : i32
    %c0_i32_0 = arith.constant 0 : i32
    return %arg0, %c0_i32 : i32, i32
  }
  func.func @transform_1(%arg0: i32) -> (i32, i32) {
    %c0_i32 = arith.constant 0 : i32
    %c0_i32_0 = arith.constant 0 : i32
    %c0_i32_1 = arith.constant 0 : i32
    return %c0_i32, %c0_i32_0 : i32, i32
  }
  func.func @transform_2(%arg0: i32) -> (i32, i32) {
    %c0_i32 = arith.constant 0 : i32
    %c0_i32_0 = arith.constant 0 : i32
    %c0_i32_1 = arith.constant 0 : i32
    return %c0_i32, %c0_i32_0 : i32, i32
  }
  func.func @transform_3(%arg0: i32) -> (i32, i32) {
    %c0_i32 = arith.constant 0 : i32
    %c0_i32_0 = arith.constant 0 : i32
    %c0_i32_1 = arith.constant 0 : i32
    return %c0_i32, %c0_i32_0 : i32, i32
  }
  func.func @transform_4(%arg0: i32) -> (i32, i32) {
    %c0_i32 = arith.constant 0 : i32
    %c0_i32_0 = arith.constant 0 : i32
    %c0_i32_1 = arith.constant 0 : i32
    return %c0_i32, %c0_i32_0 : i32, i32
  }
  func.func @transform_5(%arg0: i32) -> (i32, i32) {
    %c0_i32 = arith.constant 0 : i32
    %c0_i32_0 = arith.constant 0 : i32
    %c0_i32_1 = arith.constant 0 : i32
    return %c0_i32, %c0_i32_0 : i32, i32
  }
  func.func @transform_6(%arg0: i32) -> (i32, i32) {
    %c0_i32 = arith.constant 0 : i32
    %c0_i32_0 = arith.constant 0 : i32
    %c0_i32_1 = arith.constant 0 : i32
    return %c0_i32, %c0_i32_0 : i32, i32
  }
  func.func @transform_7(%arg0: i32) -> (i32, i32) {
    %c0_i32 = arith.constant 0 : i32
    %c0_i32_0 = arith.constant 0 : i32
    %c0_i32_1 = arith.constant 0 : i32
    return %c0_i32, %c0_i32_0 : i32, i32
  }
  func.func @transform_8(%arg0: i32) -> (i32, i32) {
    %c0_i32 = arith.constant 0 : i32
    %c0_i32_0 = arith.constant 0 : i32
    return %arg0, %c0_i32 : i32, i32
  }
  func.func @transform_9(%arg0: i32) -> (i32, i32) {
    %c0_i32 = arith.constant 0 : i32
    %c0_i32_0 = arith.constant 0 : i32
    return %arg0, %c0_i32 : i32, i32
  }
}

</mosaic_0001>

<llo_original>
// kernel: tpu_custom_call.1
$region0: #{tpu_custom_call.1}
  #allocation0 [shape = 'u32[]', space=smem, size = 0x4, offset = 0x4, fixed_abs, tag = 'smem constant byte address 0x4 - core index']
  #allocation1 [shape = 'u32[144,128]{1,0:T(1,128)}', space=vmem, size = 0x12000, scoped, tag = 'internal scratch']
  %s0 = inlined_call_operand.vmem [shape: f32[16,32], index: 0, kind: input, shape index: {}]
  %s1 = inlined_call_operand.vmem [shape: bf16[32,4], index: 1, kind: input, shape index: {}]
  %s2 = inlined_call_operand.hbm [shape: f32[1,4], index: 2, kind: input, shape index: {}]
  %s3 = inlined_call_operand.hbm [shape: bf16[32,32], index: 3, kind: input, shape index: {}]
  %s4 = inlined_call_operand.hbm [shape: f32[1,32], index: 4, kind: input, shape index: {}]
  %s5 = inlined_call_operand.vmem [shape: bf16[32,32], index: 5, kind: input, shape index: {}]
  %s6 = inlined_call_operand.vmem [shape: f32[1,32], index: 6, kind: input, shape index: {}]
  %s7 = inlined_call_operand.vmem [shape: f32[4,32], index: 7, kind: input, shape index: {}]
  %s8 = inlined_call_operand.hbm [shape: f32[2,32], index: 8, kind: output, shape index: {0}]
  %s9 = inlined_call_operand.hbm [shape: f32[2,8], index: 9, kind: output, shape index: {1}]
  %10 = xla_tuple %s8, %s9
  %s11 = sld [smem:[#allocation0]]
  $region62: #{tpu_custom_call.1} parent=0
    _
  %s13 = ssub.s32 1, %s11
  %s14 = scalar_select 0, %s13, %s11
  $region1: #{tpu_custom_call.1} parent=0
    #allocation2 [shape = 'u8[512]{0}', space=vmem, size = 0x400, scoped, tag = 'input window, operand 2, single buffered']
    #allocation3 [shape = 's32[1]{0}', space=sflag, size = 0x4, scoped, tag = 'scoped memory for tpu_custom_call.1']
    #allocation4 [shape = 's32[1]{0}', space=sflag, size = 0x4, scoped, tag = 'scoped memory for tpu_custom_call.1']
    #allocation5 [shape = 'u8[8192]{0}', space=vmem, size = 0x2000, scoped, tag = 'input window, operand 3, single buffered']
    #allocation6 [shape = 's32[1]{0}', space=sflag, size = 0x4, scoped, tag = 'scoped memory for tpu_custom_call.1']
    #allocation7 [shape = 'u8[512]{0}', space=vmem, size = 0x400, scoped, tag = 'input window, operand 4, single buffered']
    #allocation8 [shape = 'u8[1024]{0}', space=vmem, size = 0x400, scoped, tag = 'output window, operand 0, single buffered']
    #allocation9 [shape = 'u8[1024]{0}', space=vmem, size = 0x400, scoped, tag = 'output window, operand 1, single buffered']
    #allocation10 [shape = 's32[1]{0}', space=sflag, size = 0x4, scoped, tag = 'scoped memory for tpu_custom_call.1']
    %15 = vsyncpa [#allocation3], 0
    %16 = vsyncpa [#allocation6], 0
    %17 = vsyncpa [#allocation4], 0
    %18 = vsyncpa [#allocation10], 0
    // Predicated region
    $region2: #{tpu_custom_call.1} parent=1 // pred_check
      _
    $region3: #{tpu_custom_call.1} parent=1 // pred_check_branch
      %20 = sbr.rel (0) target = $region5
    $region4: #{tpu_custom_call.1} parent=1 // pred_region
      _
    $region5: #{tpu_custom_call.1} parent=1 // pred_fallthru
      _
    // Predicated region
    $region6: #{tpu_custom_call.1} parent=1 // pred_check
      _
    $region7: #{tpu_custom_call.1} parent=1 // pred_check_branch
      %22 = sbr.rel (0) target = $region9
    $region8: #{tpu_custom_call.1} parent=1 // pred_region
      _
    $region9: #{tpu_custom_call.1} parent=1 // pred_fallthru
      _
    // Predicated region
    $region10: #{tpu_custom_call.1} parent=1 // pred_check
      _
    $region11: #{tpu_custom_call.1} parent=1 // pred_check_branch
      %24 = sbr.rel (0) target = $region13
    $region12: #{tpu_custom_call.1} parent=1 // pred_region
      %s26 = ssub.s32 16, 16
      %27 = vsyncadd [#allocation3], %s26
      %s29 = sshll.u32 [#allocation2], 4
      %s30 = int_to_ptr.vmem [resolvable:$true] %s29
      %32 = dma.hbm_to_vmem [thread:$0]  %s2, 16, %s30, [#allocation3]
    $region13: #{tpu_custom_call.1} parent=1 // pred_fallthru
      _
    // Predicated region
    $region14: #{tpu_custom_call.1} parent=1 // pred_check
      _
    $region15: #{tpu_custom_call.1} parent=1 // pred_check_branch
      %34 = sbr.rel (0) target = $region17
    $region16: #{tpu_custom_call.1} parent=1 // pred_region
      %s36 = ssub.s32 256, 256
      %37 = vsyncadd [#allocation6], %s36
      %s38 = sshll.u32 [#allocation5], 4
      %s39 = int_to_ptr.vmem [resolvable:$true] %s38
      %44 = dma.hbm_to_vmem [thread:$0]  %s3, 256, %s39, [#allocation6], 64, 64, 4
    $region17: #{tpu_custom_call.1} parent=1 // pred_fallthru
      _
    // Predicated region
    $region18: #{tpu_custom_call.1} parent=1 // pred_check
      _
    $region19: #{tpu_custom_call.1} parent=1 // pred_check_branch
      %46 = sbr.rel (0) target = $region21
    $region20: #{tpu_custom_call.1} parent=1 // pred_region
      %s48 = ssub.s32 16, 16
      %49 = vsyncadd [#allocation6], %s48
      %s51 = sshll.u32 [#allocation7], 4
      %s52 = int_to_ptr.vmem [resolvable:$true] %s51
      %54 = dma.hbm_to_vmem [thread:$0]  %s4, 16, %s52, [#allocation6]
    $region21: #{tpu_custom_call.1} parent=1 // pred_fallthru
      _
    // Predicated region
    $region22: #{tpu_custom_call.1} parent=1 // pred_check
      _
    $region23: #{tpu_custom_call.1} parent=1 // pred_check_branch
      %56 = sbr.rel (0) target = $region25
    $region24: #{tpu_custom_call.1} parent=1 // pred_region
      _
    $region25: #{tpu_custom_call.1} parent=1 // pred_fallthru
      _
    // Predicated region
    $region26: #{tpu_custom_call.1} parent=1 // pred_check
      _
    $region27: #{tpu_custom_call.1} parent=1 // pred_check_branch
      %58 = sbr.rel (0) target = $region29
    $region28: #{tpu_custom_call.1} parent=1 // pred_region
      _
    $region29: #{tpu_custom_call.1} parent=1 // pred_fallthru
      _
    // Predicated region
    $region30: #{tpu_custom_call.1} parent=1 // pred_check
      _
    $region31: #{tpu_custom_call.1} parent=1 // pred_check_branch
      %60 = sbr.rel (0) target = $region33
    $region32: #{tpu_custom_call.1} parent=1 // pred_region
      _
    $region33: #{tpu_custom_call.1} parent=1 // pred_fallthru
      _
    // Predicated region
    $region34: #{tpu_custom_call.1} parent=1 // pred_check
      _
    $region35: #{tpu_custom_call.1} parent=1 // pred_check_branch
      %62 = sbr.rel (0) target = $region37
    $region36: #{tpu_custom_call.1} parent=1 // pred_region
      %63 = dma.done [#allocation3], 16
    $region37: #{tpu_custom_call.1} parent=1 // pred_fallthru
      _
    // Predicated region
    $region38: #{tpu_custom_call.1} parent=1 // pred_check
      _
    $region39: #{tpu_custom_call.1} parent=1 // pred_check_branch
      %65 = sbr.rel (0) target = $region41
    $region40: #{tpu_custom_call.1} parent=1 // pred_region
      %66 = dma.done [#allocation6], 256
    $region41: #{tpu_custom_call.1} parent=1 // pred_fallthru
      _
    // Predicated region
    $region42: #{tpu_custom_call.1} parent=1 // pred_check
      _
    $region43: #{tpu_custom_call.1} parent=1 // pred_check_branch
      %68 = sbr.rel (0) target = $region45
    $region44: #{tpu_custom_call.1} parent=1 // pred_region
      %69 = dma.done [#allocation6], 16
    $region45: #{tpu_custom_call.1} parent=1 // pred_fallthru
      _
    %v71 = vld [vmem:[%s0] sm:$0xff]
    %v72 = vld [vmem:[%s0 + $0x8] sm:$0xff]
    %v73 = vpack.c.bf16 %v72, %v71
    %v74 = vld [vmem:[%s1] sm:$0xf]
    %v75 = vld [vmem:[%s1 + $0x4] sm:$0xf]
    %v76 = vld [vmem:[%s1 + $0x8] sm:$0xf]
    %v77 = vld [vmem:[%s1 + $0xc] sm:$0xf]
    %v78 = vld [vmem:[#allocation2] sm:$0x1]
    %v80 = vlaneseq
    %v81 = vshrl.u32 %v80, 7
    %v82 = vsub.s32 0, %v81
    %v83 = vrot.slane %v78, %v82
    %v89 = vunpack.c.l.b16 %v74
    %v90 = vunpack.c.l.b16 %v75
    %v91 = vunpack.c.l.b16 %v76
    %v92 = vunpack.c.l.b16 %v77
    %v93 = vpack.c.b16 %v90, %v89
    %v94 = vpack.c.b16 %v92, %v91
    %vm97 = vcmask 261120
    %v99 = vsel %vm97, %v73, 0
    %101 = vmatprep.subr.bf16.mxu0 0
    %102 = vmatpush1.bf16.msra.mxu0 %v93
    %103 = vmatprep.subr.bf16.mxu0 0
    %104 = vmatpush1.bf16.msra.mxu0 %v94
    %105 = vmatprep.subr.bf16.mxu0 0
    %106 = vmatpush1.bf16.msra.mxu0 0
    %107 = vmatprep.subr.bf16.mxu0 0
    %108 = vmatpush1.bf16.msra.mxu0 0
    %109 = vmatprep.subr.bf16.mxu0 0
    %110 = vmatpush1.bf16.msra.mxu0 0
    %111 = vmatprep.subr.bf16.mxu0 0
    %112 = vmatpush1.bf16.msra.mxu0 0
    %113 = vmatprep.subr.bf16.mxu0 0
    %114 = vmatpush1.bf16.msra.mxu0 0
    %115 = vmatprep.subr.bf16.mxu0 0
    %116 = vmatpush1.bf16.msra.mxu0 0
    %117 = vmatprep.subr.bf16.mxu0 0
    %118 = vmatpush1.bf16.msra.mxu0 0
    %119 = vmatprep.subr.bf16.mxu0 0
    %120 = vmatpush1.bf16.msra.mxu0 0
    %121 = vmatprep.subr.bf16.mxu0 0
    %122 = vmatpush1.bf16.msra.mxu0 0
    %123 = vmatprep.subr.bf16.mxu0 0
    %124 = vmatpush1.bf16.msra.mxu0 0
    %125 = vmatprep.subr.bf16.mxu0 0
    %126 = vmatpush1.bf16.msra.mxu0 0
    %127 = vmatprep.subr.bf16.mxu0 0
    %128 = vmatpush1.bf16.msra.mxu0 0
    %129 = vmatprep.subr.bf16.mxu0 0
    %130 = vmatpush1.bf16.msra.mxu0 0
    %131 = vmatprep.subr.bf16.mxu0 0
    %132 = vmatpush1.bf16.msra.mxu0 0
    %133 = vmatprep.mubr.bf16.mxu0 0
    %134 = vmatmul.mubr.bf16.gmra.mrb[0].mxu0 %v99
    %v135 = vpop.f32.mrb[0].mxu0
    %v136 = vadd.f32 %v83, %v135
    %v137 = vpop.f32.mrb[0].mxu0
    %v138 = vpop.f32.mrb[0].mxu0
    %v139 = vadd.f32 %v83, %v138
    %v140 = vpop.f32.mrb[0].mxu0
    %141 = vdwg.mxu0
    %vm142 = vcmask 31744
    %v143 = vsel %vm142, %v136, -inf
    %v144 = vrot.slane %v143, 4
    %v145 = vmax.f32 %v143, %v144
    %v146 = vrot.slane %v145, 2
    %v147 = vmax.f32 %v145, %v146
    %v148 = vrot.slane %v147, 1
    %v149 = vmax.f32 %v147, %v148
    %v150 = vsel %vm142, %v139, -inf
    %v151 = vrot.slane %v150, 4
    %v152 = vmax.f32 %v150, %v151
    %v153 = vrot.slane %v152, 2
    %v154 = vmax.f32 %v152, %v153
    %v155 = vrot.slane %v154, 1
    %v156 = vmax.f32 %v154, %v155
    %v157 = vsub.f32 %v136, %v149
    %v158 = vsub.f32 %v139, %v156
    %v159 = vmul.f32 %v157, 1.442695
    %v160 = vpow.pop %v159
    %v161 = vmul.f32 %v158, 1.442695
    %v162 = vpow.pop %v161
    %v163 = vsel %vm142, %v160, 0.0
    %v164 = vrot.slane %v163, 4
    %v165 = vadd.f32 %v163, %v164
    %v166 = vrot.slane %v165, 2
    %v167 = vadd.f32 %v165, %v166
    %v168 = vrot.slane %v167, 1
    %v169 = vadd.f32 %v167, %v168
    %v170 = vsel %vm142, %v162, 0.0
    %v171 = vrot.slane %v170, 4
    %v172 = vadd.f32 %v170, %v171
    %v173 = vrot.slane %v172, 2
    %v174 = vadd.f32 %v172, %v173
    %v175 = vrot.slane %v174, 1
    %v176 = vadd.f32 %v174, %v175
    %v177 = vrcp.pop %v169
    %v178 = vrcp.pop %v176
    %v179 = vmul.f32 %v160, %v177
    %v180 = vmul.f32 %v162, %v178
    %v181 = vsel %vm142, %v179, 0.0
    %182 = vadd.xlane.f32.xlu0 %v181
    %v183 = vpop.xlane.xlu0 %182
    %v184 = vsel %vm142, %v180, 0.0
    %185 = vadd.xlane.f32.xlu0 %v184
    %v186 = vpop.xlane.xlu0 %185
    %v187 = vmul.f32 %v183, 0.25
    %v188 = vmul.f32 %v186, 0.25
    %v191 = vlaneseq
    %v192 = vand.u32 %v191, 127
    %v193 = vlaneseq
    %v194 = vshrl.u32 %v193, 7
    %v195 = vsub.s32 %v192, %v194
    %v196 = vrot.slane %v187, %v195
    %v197 = vlaneseq
    %v198 = vshrl.u32 %v197, 7
    %v199 = vsub.s32 %v192, %v198
    %v200 = vrot.slane %v188, %v199
    %vm201 = vcmask 1041409
    %v202 = vsel %vm201, %v200, %v196
    %vm204 = vcmask 58368
    %205 = vst.msk [vmem:[#allocation9] sm:$0x3] %vm204, %v202
    %v206 = vld [vmem:[#allocation5] sm:$0xf]
    %v207 = vld [vmem:[#allocation5 + $0x4] sm:$0xf]
    %v208 = vld [vmem:[#allocation5 + $0x8] sm:$0xf]
    %v209 = vld [vmem:[#allocation5 + $0xc] sm:$0xf]
    %v210 = vld [vmem:[#allocation7] sm:$0x1]
    %v212 = vlaneseq
    %v213 = vshrl.u32 %v212, 7
    %v214 = vsub.s32 0, %v213
    %v215 = vrot.slane %v210, %v214
    %v221 = vunpack.c.l.b16 %v206
    %v222 = vunpack.c.l.b16 %v207
    %v223 = vunpack.c.l.b16 %v208
    %v224 = vunpack.c.l.b16 %v209
    %v225 = vpack.c.b16 %v222, %v221
    %v226 = vpack.c.b16 %v224, %v223
    %229 = vmatprep.subr.bf16.mxu0 0
    %230 = vmatpush1.bf16.msra.mxu0 %v225
    %231 = vmatprep.subr.bf16.mxu0 0
    %232 = vmatpush1.bf16.msra.mxu0 %v226
    %233 = vmatprep.subr.bf16.mxu0 0
    %234 = vmatpush1.bf16.msra.mxu0 0
    %235 = vmatprep.subr.bf16.mxu0 0
    %236 = vmatpush1.bf16.msra.mxu0 0
    %237 = vmatprep.subr.bf16.mxu0 0
    %238 = vmatpush1.bf16.msra.mxu0 0
    %239 = vmatprep.subr.bf16.mxu0 0
    %240 = vmatpush1.bf16.msra.mxu0 0
    %241 = vmatprep.subr.bf16.mxu0 0
    %242 = vmatpush1.bf16.msra.mxu0 0
    %243 = vmatprep.subr.bf16.mxu0 0
    %244 = vmatpush1.bf16.msra.mxu0 0
    %245 = vmatprep.subr.bf16.mxu0 0
    %246 = vmatpush1.bf16.msra.mxu0 0
    %247 = vmatprep.subr.bf16.mxu0 0
    %248 = vmatpush1.bf16.msra.mxu0 0
    %249 = vmatprep.subr.bf16.mxu0 0
    %250 = vmatpush1.bf16.msra.mxu0 0
    %251 = vmatprep.subr.bf16.mxu0 0
    %252 = vmatpush1.bf16.msra.mxu0 0
    %253 = vmatprep.subr.bf16.mxu0 0
    %254 = vmatpush1.bf16.msra.mxu0 0
    %255 = vmatprep.subr.bf16.mxu0 0
    %256 = vmatpush1.bf16.msra.mxu0 0
    %257 = vmatprep.subr.bf16.mxu0 0
    %258 = vmatpush1.bf16.msra.mxu0 0
    %259 = vmatprep.subr.bf16.mxu0 0
    %260 = vmatpush1.bf16.msra.mxu0 0
    %261 = vmatprep.mubr.bf16.mxu0 0
    %262 = vmatmul.mubr.bf16.gmra.mrb[0].mxu0 %v99
    %v263 = vpop.f32.mrb[0].mxu0
    %v264 = vadd.f32 %v215, %v263
    %v265 = vpop.f32.mrb[0].mxu0
    %v266 = vpop.f32.mrb[0].mxu0
    %v267 = vadd.f32 %v215, %v266
    %v268 = vpop.f32.mrb[0].mxu0
    %269 = vdwg.mxu0
    %v270 = vld [vmem:[%s7] sm:$0xf]
    %v272 = vsel %vm142, %v179, 0
    %v275 = vsel %vm142, %v180, 0
    %vm277 = vcmask 1043456
    %v279 = vsel %vm277, %v270, 0
    %281 = vmatprep.subr.mxu0 0.0
    %282 = vmatpush1.msra.mxu0 %v279
    %283 = vmatprep.subr.mxu0 0.0
    %284 = vmatpush1.msra.mxu0 0.0
    %285 = vmatprep.subr.mxu0 0.0
    %286 = vmatpush1.msra.mxu0 0.0
    %287 = vmatprep.subr.mxu0 0.0
    %288 = vmatpush1.msra.mxu0 0.0
    %289 = vmatprep.subr.mxu0 0.0
    %290 = vmatpush1.msra.mxu0 0.0
    %291 = vmatprep.subr.mxu0 0.0
    %292 = vmatpush1.msra.mxu0 0.0
    %293 = vmatprep.subr.mxu0 0.0
    %294 = vmatpush1.msra.mxu0 0.0
    %295 = vmatprep.subr.mxu0 0.0
    %296 = vmatpush1.msra.mxu0 0.0
    %297 = vmatprep.subr.mxu0 0.0
    %298 = vmatpush1.msra.mxu0 0.0
    %299 = vmatprep.subr.mxu0 0.0
    %300 = vmatpush1.msra.mxu0 0.0
    %301 = vmatprep.subr.mxu0 0.0
    %302 = vmatpush1.msra.mxu0 0.0
    %303 = vmatprep.subr.mxu0 0.0
    %304 = vmatpush1.msra.mxu0 0.0
    %305 = vmatprep.subr.mxu0 0.0
    %306 = vmatpush1.msra.mxu0 0.0
    %307 = vmatprep.subr.mxu0 0.0
    %308 = vmatpush1.msra.mxu0 0.0
    %309 = vmatprep.subr.mxu0 0.0
    %310 = vmatpush1.msra.mxu0 0.0
    %311 = vmatprep.subr.mxu0 0.0
    %312 = vmatpush1.msra.mxu0 0.0
    %313 = vmatprep.subr.mxu0 0.0
    %314 = vmatpush1.msra.mxu0 0.0
    %315 = vmatprep.subr.mxu0 0.0
    %316 = vmatpush1.msra.mxu0 0.0
    %317 = vmatprep.subr.mxu0 0.0
    %318 = vmatpush1.msra.mxu0 0.0
    %319 = vmatprep.subr.mxu0 0.0
    %320 = vmatpush1.msra.mxu0 0.0
    %321 = vmatprep.subr.mxu0 0.0
    %322 = vmatpush1.msra.mxu0 0.0
    %323 = vmatprep.subr.mxu0 0.0
    %324 = vmatpush1.msra.mxu0 0.0
    %325 = vmatprep.subr.mxu0 0.0
    %326 = vmatpush1.msra.mxu0 0.0
    %327 = vmatprep.subr.mxu0 0.0
    %328 = vmatpush1.msra.mxu0 0.0
    %329 = vmatprep.subr.mxu0 0.0
    %330 = vmatpush1.msra.mxu0 0.0
    %331 = vmatprep.subr.mxu0 0.0
    %332 = vmatpush1.msra.mxu0 0.0
    %333 = vmatprep.subr.mxu0 0.0
    %334 = vmatpush1.msra.mxu0 0.0
    %335 = vmatprep.subr.mxu0 0.0
    %336 = vmatpush1.msra.mxu0 0.0
    %337 = vmatprep.subr.mxu0 0.0
    %338 = vmatpush1.msra.mxu0 0.0
    %339 = vmatprep.subr.mxu0 0.0
    %340 = vmatpush1.msra.mxu0 0.0
    %341 = vmatprep.subr.mxu0 0.0
    %342 = vmatpush1.msra.mxu0 0.0
    %343 = vmatprep.subr.mxu0 0.0
    %344 = vmatpush1.msra.mxu0 0.0
    %345 = vmatprep.mubr.f32.mxu0 0.0
    %346 = vmatmul.mubr.f32.gmra.mrb[0].mxu0 %v272
    %v347 = vpop.f32.mrb[0].mxu0
    %v348 = vadd.f32 0.0, %v347
    %v349 = vpop.f32.mrb[0].mxu0
    %350 = vmatprep.mubr.f32.mxu0 0.0
    %351 = vmatmul.mubr.f32.gmra.mrb[0].mxu0 %v275
    %v352 = vpop.f32.mrb[0].mxu0
    %v353 = vadd.f32 0.0, %v352
    %v354 = vpop.f32.mrb[0].mxu0
    %355 = vdwg.mxu0
    %v356 = vmul.f32 %v348, %v264
    %v357 = vmul.f32 %v353, %v267
    %v358 = vsel %vm97, %v356, 0.0
    %v359 = vrot.slane %v358, 4
    %v360 = vadd.f32 %v358, %v359
    %v361 = vrot.slane %v360, 2
    %v362 = vadd.f32 %v360, %v361
    %v363 = vrot.slane %v362, 1
    %v364 = vadd.f32 %v362, %v363
    %v365 = vsel %vm97, %v357, 0.0
    %v366 = vrot.slane %v365, 4
    %v367 = vadd.f32 %v365, %v366
    %v368 = vrot.slane %v367, 2
    %v369 = vadd.f32 %v367, %v368
    %v370 = vrot.slane %v369, 1
    %v371 = vadd.f32 %v369, %v370
    %v372 = vpack.c.bf16 %v364, %v364
    %v373 = vpack.c.bf16 %v371, %v371
    %v374 = vld [vmem:[%s5] sm:$0xf]
    %v375 = vld [vmem:[%s5 + $0x4] sm:$0xf]
    %v376 = vld [vmem:[%s5 + $0x8] sm:$0xf]
    %v377 = vld [vmem:[%s5 + $0xc] sm:$0xf]
    %v378 = vld [vmem:[%s6] sm:$0x1]
    %v380 = vlaneseq
    %v381 = vshrl.u32 %v380, 7
    %v382 = vsub.s32 0, %v381
    %v383 = vrot.slane %v378, %v382
    %v387 = vunpack.c.l.b16 %v372
    %v388 = vunpack.c.l.b16 %v373
    %v389 = vsel %vm201, %v388, %v387
    %v390 = vpack.c.b16 %v389, %v389
    %v395 = vunpack.c.l.b16 %v374
    %v396 = vunpack.c.l.b16 %v375
    %v397 = vunpack.c.l.b16 %v376
    %v398 = vunpack.c.l.b16 %v377
    %v399 = vpack.c.b16 %v396, %v395
    %v400 = vpack.c.b16 %v398, %v397
    %v404 = vsel %vm97, %v390, 0
    %406 = vmatprep.subr.bf16.mxu0 0
    %407 = vmatpush1.bf16.msra.mxu0 %v399
    %408 = vmatprep.subr.bf16.mxu0 0
    %409 = vmatpush1.bf16.msra.mxu0 %v400
    %410 = vmatprep.subr.bf16.mxu0 0
    %411 = vmatpush1.bf16.msra.mxu0 0
    %412 = vmatprep.subr.bf16.mxu0 0
    %413 = vmatpush1.bf16.msra.mxu0 0
    %414 = vmatprep.subr.bf16.mxu0 0
    %415 = vmatpush1.bf16.msra.mxu0 0
    %416 = vmatprep.subr.bf16.mxu0 0
    %417 = vmatpush1.bf16.msra.mxu0 0
    %418 = vmatprep.subr.bf16.mxu0 0
    %419 = vmatpush1.bf16.msra.mxu0 0
    %420 = vmatprep.subr.bf16.mxu0 0
    %421 = vmatpush1.bf16.msra.mxu0 0
    %422 = vmatprep.subr.bf16.mxu0 0
    %423 = vmatpush1.bf16.msra.mxu0 0
    %424 = vmatprep.subr.bf16.mxu0 0
    %425 = vmatpush1.bf16.msra.mxu0 0
    %426 = vmatprep.subr.bf16.mxu0 0
    %427 = vmatpush1.bf16.msra.mxu0 0
    %428 = vmatprep.subr.bf16.mxu0 0
    %429 = vmatpush1.bf16.msra.mxu0 0
    %430 = vmatprep.subr.bf16.mxu0 0
    %431 = vmatpush1.bf16.msra.mxu0 0
    %432 = vmatprep.subr.bf16.mxu0 0
    %433 = vmatpush1.bf16.msra.mxu0 0
    %434 = vmatprep.subr.bf16.mxu0 0
    %435 = vmatpush1.bf16.msra.mxu0 0
    %436 = vmatprep.subr.bf16.mxu0 0
    %437 = vmatpush1.bf16.msra.mxu0 0
    %438 = vmatprep.mubr.bf16.mxu0 0
    %439 = vmatmul.mubr.bf16.gmra.mrb[0].mxu0 %v404
    %v440 = vpop.f32.mrb[0].mxu0
    %v441 = vadd.f32 %v383, %v440
    %v442 = vpop.f32.mrb[0].mxu0
    %v443 = vpop.f32.mrb[0].mxu0
    %v444 = vpop.f32.mrb[0].mxu0
    %445 = vdwg.mxu0
    %vm446 = vcmask 254976
    %447 = vst.msk [vmem:[#allocation8] sm:$0x3] %vm446, %v441
    // Predicated region
    $region46: #{tpu_custom_call.1} parent=1 // pred_check
      _
    $region47: #{tpu_custom_call.1} parent=1 // pred_check_branch
      %449 = sbr.rel (0) target = $region49
    $region48: #{tpu_custom_call.1} parent=1 // pred_region
      %s451 = ssub.s32 32, 32
      %452 = vsyncadd [#allocation4], %s451
      %s454 = sshll.u32 [#allocation8], 4
      %s455 = int_to_ptr.vmem [resolvable:$true] %s454
      %457 = dma.vmem_to_hbm [thread:$0]  %s455, 32, %s8, [#allocation4]
    $region49: #{tpu_custom_call.1} parent=1 // pred_fallthru
      _
    // Predicated region
    $region50: #{tpu_custom_call.1} parent=1 // pred_check
      _
    $region51: #{tpu_custom_call.1} parent=1 // pred_check_branch
      %459 = sbr.rel (0) target = $region53
    $region52: #{tpu_custom_call.1} parent=1 // pred_region
      %s461 = ssub.s32 32, 32
      %462 = vsyncadd [#allocation10], %s461
      %s464 = sshll.u32 [#allocation9], 4
      %s465 = int_to_ptr.vmem [resolvable:$true] %s464
      %467 = dma.vmem_to_hbm [thread:$0]  %s465, 32, %s9, [#allocation10]
    $region53: #{tpu_custom_call.1} parent=1 // pred_fallthru
      _
    // Predicated region
    $region54: #{tpu_custom_call.1} parent=1 // pred_check
      _
    $region55: #{tpu_custom_call.1} parent=1 // pred_check_branch
      %469 = sbr.rel (0) target = $region57
    $region56: #{tpu_custom_call.1} parent=1 // pred_region
      %470 = dma.done [#allocation4], 32
    $region57: #{tpu_custom_call.1} parent=1 // pred_fallthru
      _
    // Predicated region
    $region58: #{tpu_custom_call.1} parent=1 // pred_check
      _
    $region59: #{tpu_custom_call.1} parent=1 // pred_check_branch
      %472 = sbr.rel (0) target = $region61
    $region60: #{tpu_custom_call.1} parent=1 // pred_region
      %473 = dma.done [#allocation10], 32
    $region61: #{tpu_custom_call.1} parent=1 // pred_fallthru
      _
    %474 = vsyncpa [#allocation3], 1
    %475 = vsyncpa [#allocation6], 1
    %476 = vsyncpa [#allocation4], 1
    %477 = vsyncpa [#allocation10], 1

</llo_original>
